<compile_context>
chip_gen: v7x
topology: tpu7x:2x2x1
jax: 0.10.0
libtpu: 0.0.40
codegen_flags: <defaults>
</compile_context>

<pallas_src>
import functools

import jax
import jax.numpy as jnp
from jax.experimental import pallas as pl
from jax.experimental.pallas import tpu as pltpu


def _laplacian_kernel(m_ref, x_ref, o_ref, *, W):
    """One block of `ng` whole images, each flattened row-major into H*W lanes.

    m_ref: (4, H*W) f32 {0,1} masks (up, down, left, right neighbour exists).
    x_ref / o_ref: (ng, H*W) blocks in the input dtype.
    """
    HW = x_ref.shape[-1]
    x = x_ref[...]                       # native dtype (rolls stay narrow for bf16)

    m_up    = m_ref[0:1, :]
    m_down  = m_ref[1:2, :]
    m_left  = m_ref[2:3, :]
    m_right = m_ref[3:4, :]

    # Running accumulator (f32) — few (ng, HW)-shaped temporaries live at once.
    acc = x.astype(jnp.float32) * (-4.0)
    acc = acc + pltpu.roll(x, shift=W,      axis=1) * m_up      # x[i-1, j]
    acc = acc + pltpu.roll(x, shift=HW - W, axis=1) * m_down    # x[i+1, j]
    acc = acc + pltpu.roll(x, shift=1,      axis=1) * m_left    # x[i, j-1]
    acc = acc + pltpu.roll(x, shift=HW - 1, axis=1) * m_right   # x[i, j+1]

    o_ref[...] = acc.astype(o_ref.dtype)


def _choose_images_per_block(N, H, W, itemsize, *, target_bytes=2 << 20, want_steps=4):
    """Pick how many whole images (block sublane dim) go into one grid step.

    Constraint: block sublane dim must be a multiple of 8 or equal the full N.
    Prefer blocks <= target_bytes with >= want_steps grid steps (pipelining +
    v7x megacore), taking the largest such block; degrade gracefully.
    """
    per_image = H * W * itemsize
    cands = [ng for ng in range(1, N + 1)
             if N % ng == 0 and (ng == N or ng % 8 == 0)]
    for steps in (want_steps, 2, 1):
        fitting = [ng for ng in cands
                   if ng * per_image <= target_bytes and (N // ng) >= steps]
        if fitting:
            return max(fitting)
    # TODO(synk): very large single images need H-tiling with a 1-row halo;
    # fall back to the smallest legal whole-image block for now.
    return min(cands)


def gradient_forward(x):
    """x: (N, 1, H, W) -> (N, 1, H, W); conv2d with [[0,1,0],[1,-4,1],[0,1,0]], padding=1."""
    N, C, H, W = x.shape
    assert C == 1, "gradient module uses a (1,1,3,3) weight: input must have 1 channel"
    dtype = x.dtype
    HW = H * W

    # Free reshape: HBM layout of (N,1,H,W) and (N, H*W) is identical.
    x2 = x.reshape(N, HW)

    # Tiny {0,1} lane-edge masks, computed once outside the kernel.
    f = jnp.arange(HW, dtype=jnp.int32)
    masks = jnp.stack([
        (f >= W),            # up neighbour exists
        (f < HW - W),        # down neighbour exists
        (f % W != 0),        # left neighbour exists
        (f % W != W - 1),    # right neighbour exists
    ]).astype(jnp.float32)   # (4, HW)

    ng = _choose_images_per_block(N, H, W, jnp.dtype(dtype).itemsize)
    grid = (N // ng,)

    out2 = pl.pallas_call(
        functools.partial(_laplacian_kernel, W=W),
        out_shape=jax.ShapeDtypeStruct((N, HW), dtype),
        grid_spec=pltpu.PrefetchScalarGridSpec(
            num_scalar_prefetch=0,
            grid=grid,
            in_specs=[
                pl.BlockSpec((4, HW), lambda g: (0, 0)),    # masks: resident
                pl.BlockSpec((ng, HW), lambda g: (g, 0)),   # input stream
            ],
            out_specs=pl.BlockSpec((ng, HW), lambda g: (g, 0)),
        ),
        compiler_params=pltpu.CompilerParams(
            dimension_semantics=("parallel",),
            vmem_limit_bytes=48 * 1024 * 1024,
        ),
    )(masks, x2)

    return out2.reshape(N, 1, H, W)


def _reference(x):
    # Pure-JAX reference: zero-pad + explicit 3x3 Laplacian stencil.
    xp = jnp.pad(x, ((0, 0), (0, 0), (1, 1), (1, 1)))
    up    = xp[:, :, 0:-2, 1:-1]
    down  = xp[:, :, 2:,   1:-1]
    left  = xp[:, :, 1:-1, 0:-2]
    right = xp[:, :, 1:-1, 2:]
    return up + down + left + right - 4.0 * x


if __name__ == "__main__":
    key = jax.random.PRNGKey(0)
    x = jax.random.normal(key, (2, 1, 16, 16), dtype=jnp.float32)

    out = jax.block_until_ready(gradient_forward(x))

    ref = _reference(x)
    assert out.shape == (2, 1, 16, 16)
    assert out.dtype == x.dtype
    assert jnp.allclose(out, ref, atol=1e-5, rtol=1e-5), "mismatch vs reference"

    print("KERNEL_OK")
</pallas_src>

<mosaic_0001>
module attributes {stable_mosaic.version = 11 : i64} {
  func.func @_laplacian_kernel(%arg0: i32, %arg1: memref<4x256xf32, #tpu.memory_space<vmem>>, %arg2: memref<2x256xf32, #tpu.memory_space<vmem>>, %arg3: memref<2x256xf32, #tpu.memory_space<vmem>>) attributes {dimension_semantics = [#tpu.dimension_semantics<parallel>], iteration_bounds = array<i64: 1>, scalar_prefetch = 0 : i64, scratch_operands = 0 : i64, tpu.core_type = #tpu.core_type<tc>, window_params = [{pipeline_mode = #tpu.pipeline_mode<synchronous>, transform_indices = @transform_0, window_bounds = array<i64: 4, 256>}, {transform_indices = @transform_1, window_bounds = array<i64: 2, 256>}, {transform_indices = @transform_2, window_bounds = array<i64: 2, 256>}]} {
    %c0 = arith.constant 0 : index
    %c0_0 = arith.constant 0 : index
    %0 = vector.load %arg2[%c0, %c0_0] : memref<2x256xf32, #tpu.memory_space<vmem>>, vector<2x256xf32>
    %c0_1 = arith.constant 0 : index
    %c0_2 = arith.constant 0 : index
    %1 = vector.load %arg1[%c0_1, %c0_2] : memref<4x256xf32, #tpu.memory_space<vmem>>, vector<1x256xf32>
    %c1 = arith.constant 1 : index
    %c0_3 = arith.constant 0 : index
    %2 = vector.load %arg1[%c1, %c0_3] : memref<4x256xf32, #tpu.memory_space<vmem>>, vector<1x256xf32>
    %c2 = arith.constant 2 : index
    %c0_4 = arith.constant 0 : index
    %3 = vector.load %arg1[%c2, %c0_4] : memref<4x256xf32, #tpu.memory_space<vmem>>, vector<1x256xf32>
    %c3 = arith.constant 3 : index
    %c0_5 = arith.constant 0 : index
    %4 = vector.load %arg1[%c3, %c0_5] : memref<4x256xf32, #tpu.memory_space<vmem>>, vector<1x256xf32>
    %cst = arith.constant -4.000000e+00 : f32
    %5 = vector.broadcast %cst : f32 to vector<2x256xf32>
    %6 = arith.mulf %0, %5 : vector<2x256xf32>
    %c16_i32 = arith.constant 16 : i32
    %7 = tpu.dynamic_rotate %0 by %c16_i32 dim 1 : vector<2x256xf32>, i32 -> vector<2x256xf32>
    %8 = vector.broadcast %1 : vector<1x256xf32> to vector<2x256xf32>
    %9 = arith.mulf %7, %8 : vector<2x256xf32>
    %10 = arith.addf %6, %9 : vector<2x256xf32>
    %c240_i32 = arith.constant 240 : i32
    %11 = tpu.dynamic_rotate %0 by %c240_i32 dim 1 : vector<2x256xf32>, i32 -> vector<2x256xf32>
    %12 = vector.broadcast %2 : vector<1x256xf32> to vector<2x256xf32>
    %13 = arith.mulf %11, %12 : vector<2x256xf32>
    %14 = arith.addf %10, %13 : vector<2x256xf32>
    %c1_i32 = arith.constant 1 : i32
    %15 = tpu.dynamic_rotate %0 by %c1_i32 dim 1 : vector<2x256xf32>, i32 -> vector<2x256xf32>
    %16 = vector.broadcast %3 : vector<1x256xf32> to vector<2x256xf32>
    %17 = arith.mulf %15, %16 : vector<2x256xf32>
    %18 = arith.addf %14, %17 : vector<2x256xf32>
    %c255_i32 = arith.constant 255 : i32
    %19 = tpu.dynamic_rotate %0 by %c255_i32 dim 1 : vector<2x256xf32>, i32 -> vector<2x256xf32>
    %20 = vector.broadcast %4 : vector<1x256xf32> to vector<2x256xf32>
    %21 = arith.mulf %19, %20 : vector<2x256xf32>
    %22 = arith.addf %18, %21 : vector<2x256xf32>
    %c0_6 = arith.constant 0 : index
    %c0_7 = arith.constant 0 : index
    %23 = vector.load %arg3[%c0_6, %c0_7] : memref<2x256xf32, #tpu.memory_space<vmem>>, vector<2x256xf32>
    tpu.vector_store %arg3[%c0_6, %c0_7], %22 {strides = array<i32>} : memref<2x256xf32, #tpu.memory_space<vmem>>, vector<2x256xf32>,
    return
  }
  func.func @transform_0(%arg0: i32) -> (i32, i32) {
    %c0_i32 = arith.constant 0 : i32
    %c0_i32_0 = arith.constant 0 : i32
    %c0_i32_1 = arith.constant 0 : i32
    return %c0_i32, %c0_i32_0 : i32, i32
  }
  func.func @transform_1(%arg0: i32) -> (i32, i32) {
    %c0_i32 = arith.constant 0 : i32
    %c0_i32_0 = arith.constant 0 : i32
    return %arg0, %c0_i32 : i32, i32
  }
  func.func @transform_2(%arg0: i32) -> (i32, i32) {
    %c0_i32 = arith.constant 0 : i32
    %c0_i32_0 = arith.constant 0 : i32
    return %arg0, %c0_i32 : i32, i32
  }
}

</mosaic_0001>

<llo_original>
// kernel: tpu_custom_call.1
$region0: #{tpu_custom_call.1}
  #allocation0 [shape = 'u32[]', space=smem, size = 0x4, offset = 0x4, fixed_abs, tag = 'smem constant byte address 0x4 - core index']
  #allocation1 [shape = 'u32[144,128]{1,0:T(1,128)}', space=vmem, size = 0x12000, scoped, tag = 'internal scratch']
  %s0 = inlined_call_operand.hbm [shape: f32[4,256], index: 0, kind: input, shape index: {}]
  %s1 = inlined_call_operand.hbm [shape: f32[2,256], index: 1, kind: input, shape index: {}]
  %s2 = inlined_call_operand.hbm [shape: f32[2,256], index: 2, kind: output, shape index: {}]
  %s3 = sld [smem:[#allocation0]]
  $region26: #{tpu_custom_call.1} parent=0
    _
  %s5 = ssub.s32 1, %s3
  %s6 = scalar_select 0, %s5, %s3
  $region1: #{tpu_custom_call.1} parent=0
    #allocation2 [shape = 'u8[4096]{0}', space=vmem, size = 0x1000, scoped, tag = 'input window, operand 0, single buffered']
    #allocation3 [shape = 's32[1]{0}', space=sflag, size = 0x4, scoped, tag = 'scoped memory for tpu_custom_call.1']
    #allocation4 [shape = 's32[1]{0}', space=sflag, size = 0x4, scoped, tag = 'scoped memory for tpu_custom_call.1']
    #allocation5 [shape = 'u8[2048]{0}', space=vmem, size = 0x800, scoped, tag = 'input window, operand 1, single buffered']
    #allocation6 [shape = 's32[1]{0}', space=sflag, size = 0x4, scoped, tag = 'scoped memory for tpu_custom_call.1']
    #allocation7 [shape = 'u8[2048]{0}', space=vmem, size = 0x800, scoped, tag = 'output window, operand 0, single buffered']
    %7 = vsyncpa [#allocation3], 0
    %8 = vsyncpa [#allocation6], 0
    %9 = vsyncpa [#allocation4], 0
    // Predicated region
    $region2: #{tpu_custom_call.1} parent=1 // pred_check
      _
    $region3: #{tpu_custom_call.1} parent=1 // pred_check_branch
      %11 = sbr.rel (0) target = $region5
    $region4: #{tpu_custom_call.1} parent=1 // pred_region
      %s13 = ssub.s32 128, 128
      %14 = vsyncadd [#allocation3], %s13
      %s16 = sshll.u32 [#allocation2], 4
      %s17 = int_to_ptr.vmem [resolvable:$true] %s16
      %19 = dma.hbm_to_vmem [thread:$0]  %s0, 128, %s17, [#allocation3]
    $region5: #{tpu_custom_call.1} parent=1 // pred_fallthru
      _
    // Predicated region
    $region6: #{tpu_custom_call.1} parent=1 // pred_check
      _
    $region7: #{tpu_custom_call.1} parent=1 // pred_check_branch
      %21 = sbr.rel (0) target = $region9
    $region8: #{tpu_custom_call.1} parent=1 // pred_region
      %s23 = ssub.s32 64, 64
      %24 = vsyncadd [#allocation6], %s23
      %s26 = sshll.u32 [#allocation5], 4
      %s27 = int_to_ptr.vmem [resolvable:$true] %s26
      %29 = dma.hbm_to_vmem [thread:$0]  %s1, 64, %s27, [#allocation6]
    $region9: #{tpu_custom_call.1} parent=1 // pred_fallthru
      _
    // Predicated region
    $region10: #{tpu_custom_call.1} parent=1 // pred_check
      _
    $region11: #{tpu_custom_call.1} parent=1 // pred_check_branch
      %31 = sbr.rel (0) target = $region13
    $region12: #{tpu_custom_call.1} parent=1 // pred_region
      %32 = dma.done [#allocation3], 128
    $region13: #{tpu_custom_call.1} parent=1 // pred_fallthru
      _
    // Predicated region
    $region14: #{tpu_custom_call.1} parent=1 // pred_check
      _
    $region15: #{tpu_custom_call.1} parent=1 // pred_check_branch
      %34 = sbr.rel (0) target = $region17
    $region16: #{tpu_custom_call.1} parent=1 // pred_region
      %35 = dma.done [#allocation6], 64
    $region17: #{tpu_custom_call.1} parent=1 // pred_fallthru
      _
    %v36 = vld [vmem:[#allocation5] sm:$0xf]
    %v37 = vld [vmem:[#allocation2] ss:$4 sm:$0x3]
    %s38 = scalar_lea.vmem [#allocation2], 1
    %v39 = vld [vmem:[%s38] ss:$4 sm:$0x3]
    %s40 = scalar_lea.vmem [#allocation2], 2
    %v41 = vld [vmem:[%s40] ss:$4 sm:$0x3]
    %s42 = scalar_lea.vmem [#allocation2], 3
    %v43 = vld [vmem:[%s42] ss:$4 sm:$0x3]
    %v44 = vmul.f32 %v36, -4.0
    %v47 = vunpack.c.l.s4 1983009808
    %v48 = vunpack.c.0.s8 %v47
    %v49 = vlaneseq
    %v50 = vshrl.u32 %v49, 7
    %v51 = vsub.s32 %v48, %v50
    %v52 = vrot.slane %v36, %v51
    %v53 = vcombine.high %v52, %v52
    %56 = vrot.lane.b32.xlu0 %v52, 16
    %v57 = vpop.permute.xlu0 %56
    %58 = vrot.lane.b32.xlu0 %v53, 16
    %v59 = vpop.permute.xlu0 %58
    %v60 = vlaneseq
    %v61 = vand.u32 %v60, 127
    %vm62 = vcmp.lt.s32.totalorder %v61, 16
    %v63 = vsel %vm62, %v57, %v59
    %v64 = vsel %vm62, %v59, %v57
    %v66 = vlaneseq
    %v67 = vshrl.u32 %v66, 7
    %v68 = vsub.s32 0, %v67
    %v69 = vrot.slane %v37, %v68
    %v70 = vlaneseq
    %v71 = vshrl.u32 %v70, 7
    %v72 = vsub.s32 1, %v71
    %v73 = vrot.slane %v37, %v72
    %v76 = vmul.f32 %v64, %v69
    %v77 = vmul.f32 %v63, %v73
    %v80 = vcombine.low %v76, %v77
    %v82 = vunpack.c.l.s4 1983009808
    %v83 = vunpack.c.0.s8 %v82
    %v84 = vlaneseq
    %v85 = vshrl.u32 %v84, 7
    %v86 = vsub.s32 %v83, %v85
    %v87 = vrot.slane %v80, %v86
    %v89 = vadd.f32 %v44, %v87
    %90 = vrot.lane.b32.xlu0 %v52, 112
    %v91 = vpop.permute.xlu0 %90
    %92 = vrot.lane.b32.xlu0 %v53, 112
    %v93 = vpop.permute.xlu0 %92
    %vm94 = vcmp.lt.s32.totalorder %v61, 112
    %v95 = vsel %vm94, %v91, %v93
    %v96 = vsel %vm94, %v93, %v91
    %v98 = vlaneseq
    %v99 = vshrl.u32 %v98, 7
    %v100 = vsub.s32 0, %v99
    %v101 = vrot.slane %v39, %v100
    %v102 = vlaneseq
    %v103 = vshrl.u32 %v102, 7
    %v104 = vsub.s32 1, %v103
    %v105 = vrot.slane %v39, %v104
    %v108 = vmul.f32 %v95, %v101
    %v109 = vmul.f32 %v96, %v105
    %v112 = vcombine.low %v108, %v109
    %v114 = vunpack.c.l.s4 1983009808
    %v115 = vunpack.c.0.s8 %v114
    %v116 = vlaneseq
    %v117 = vshrl.u32 %v116, 7
    %v118 = vsub.s32 %v115, %v117
    %v119 = vrot.slane %v112, %v118
    %v121 = vadd.f32 %v89, %v119
    %122 = vrot.lane.b32.xlu0 %v52, 1
    %v123 = vpop.permute.xlu0 %122
    %124 = vrot.lane.b32.xlu0 %v53, 1
    %v125 = vpop.permute.xlu0 %124
    %vm126 = vcmp.lt.s32.totalorder %v61, 1
    %v127 = vsel %vm126, %v123, %v125
    %v128 = vsel %vm126, %v125, %v123
    %v130 = vlaneseq
    %v131 = vshrl.u32 %v130, 7
    %v132 = vsub.s32 0, %v131
    %v133 = vrot.slane %v41, %v132
    %v134 = vlaneseq
    %v135 = vshrl.u32 %v134, 7
    %v136 = vsub.s32 1, %v135
    %v137 = vrot.slane %v41, %v136
    %v140 = vmul.f32 %v128, %v133
    %v141 = vmul.f32 %v127, %v137
    %v144 = vcombine.low %v140, %v141
    %v146 = vunpack.c.l.s4 1983009808
    %v147 = vunpack.c.0.s8 %v146
    %v148 = vlaneseq
    %v149 = vshrl.u32 %v148, 7
    %v150 = vsub.s32 %v147, %v149
    %v151 = vrot.slane %v144, %v150
    %v153 = vadd.f32 %v121, %v151
    %154 = vrot.lane.b32.xlu0 %v52, 127
    %v155 = vpop.permute.xlu0 %154
    %156 = vrot.lane.b32.xlu0 %v53, 127
    %v157 = vpop.permute.xlu0 %156
    %vm158 = vcmp.lt.s32.totalorder %v61, 127
    %v159 = vsel %vm158, %v155, %v157
    %v160 = vsel %vm158, %v157, %v155
    %v162 = vlaneseq
    %v163 = vshrl.u32 %v162, 7
    %v164 = vsub.s32 0, %v163
    %v165 = vrot.slane %v43, %v164
    %v166 = vlaneseq
    %v167 = vshrl.u32 %v166, 7
    %v168 = vsub.s32 1, %v167
    %v169 = vrot.slane %v43, %v168
    %v172 = vmul.f32 %v159, %v165
    %v173 = vmul.f32 %v160, %v169
    %v176 = vcombine.low %v172, %v173
    %v178 = vunpack.c.l.s4 1983009808
    %v179 = vunpack.c.0.s8 %v178
    %v180 = vlaneseq
    %v181 = vshrl.u32 %v180, 7
    %v182 = vsub.s32 %v179, %v181
    %v183 = vrot.slane %v176, %v182
    %v185 = vadd.f32 %v153, %v183
    %186 = vst [vmem:[#allocation7] sm:$0xf] %v185
    // Predicated region
    $region18: #{tpu_custom_call.1} parent=1 // pred_check
      _
    $region19: #{tpu_custom_call.1} parent=1 // pred_check_branch
      %188 = sbr.rel (0) target = $region21
    $region20: #{tpu_custom_call.1} parent=1 // pred_region
      %s190 = ssub.s32 64, 64
      %191 = vsyncadd [#allocation4], %s190
      %s193 = sshll.u32 [#allocation7], 4
      %s194 = int_to_ptr.vmem [resolvable:$true] %s193
      %196 = dma.vmem_to_hbm [thread:$0]  %s194, 64, %s2, [#allocation4]
    $region21: #{tpu_custom_call.1} parent=1 // pred_fallthru
      _
    // Predicated region
    $region22: #{tpu_custom_call.1} parent=1 // pred_check
      _
    $region23: #{tpu_custom_call.1} parent=1 // pred_check_branch
      %198 = sbr.rel (0) target = $region25
    $region24: #{tpu_custom_call.1} parent=1 // pred_region
      %199 = dma.done [#allocation4], 64
    $region25: #{tpu_custom_call.1} parent=1 // pred_fallthru
      _
    %200 = vsyncpa [#allocation3], 1
    %201 = vsyncpa [#allocation6], 1
    %202 = vsyncpa [#allocation4], 1

</llo_original>
